<compile_context>
chip_gen: v6e
topology: v6e:2x2x1
jax: 0.10.0
libtpu: 0.0.40
codegen_flags: <defaults>
</compile_context>

<pallas_src>
import jax
import jax.numpy as jnp
from jax.experimental import pallas as pl
from jax.experimental.pallas import tpu as pltpu


def mscam_kernel(x_ref, w1_ref, b1_ref, w2_ref, gb_ref, o_ref):
    """One grid step = one (batch, spatial-tile).

    x_ref : (C, T)    input tile, lane dim = spatial
    w1_ref: (Cr, C)   folded conv1+bn1 of local branch
    b1_ref: (Cr, 1)   folded bias1 of local branch
    w2_ref: (C, Cr)   folded conv2+bn2 of local branch
    gb_ref: (C, 1)    per-batch (global-branch output + folded local bias2)
    o_ref : (C, T)    output tile
    """
    x = x_ref[...].astype(jnp.float32)                                 # (C, T)

    # local branch: per-pixel 1x1-conv MLP (weight on the left -> lane-dense)
    h = jnp.dot(w1_ref[...], x,
                preferred_element_type=jnp.float32) + b1_ref[...]      # (Cr, T)
    h = jnp.maximum(h, 0.0)
    l = jnp.dot(w2_ref[...], h,
                preferred_element_type=jnp.float32) + gb_ref[...]      # (C, T)

    # fuse: sigmoid gate, elementwise scale of the input
    o_ref[...] = (x * jax.nn.sigmoid(l)).astype(o_ref.dtype)


def fold_conv_bn(w, b, gamma, beta, rmean, rvar, eps=1e-5):
    """Fold Conv2d(1x1, weight (out,in), bias (out,)) + BatchNorm2d(eval) into a
    left-multiply weight (out, in) and a bias (out,)."""
    scale = gamma / jnp.sqrt(rvar + eps)
    w_f = w * scale[:, None]                       # (out, in)
    b_f = scale * (b - rmean) + beta               # (out,)
    return w_f.astype(jnp.float32), b_f.astype(jnp.float32)


def _pick_hw_tile(hw, target=1024):
    """Largest power-of-two multiple of 128 (<= target) dividing hw; else full hw."""
    if hw % 128 != 0:
        return hw                                  # full-extent block is always legal
    t = 128
    while t * 2 <= min(hw, target) and hw % (t * 2) == 0:
        t *= 2
    return t


def mscam_forward(x_nchw, params):
    N, C, H, W = x_nchw.shape
    HW = H * W
    x = x_nchw.reshape(N, C, HW)                   # free reshape; lane dim = HW

    w1l, b1l = fold_conv_bn(*params["local1"])
    w2l, b2l = fold_conv_bn(*params["local2"])
    w1g, b1g = fold_conv_bn(*params["global1"])
    w2g, b2g = fold_conv_bn(*params["global2"])
    Cr = w1l.shape[0]

    # --- global branch (tiny, O(N*C)) in plain JAX over the FULL H*W ---
    pooled = jnp.mean(x.astype(jnp.float32), axis=-1)          # (N, C)
    g1 = jnp.maximum(pooled @ w1g.T + b1g, 0.0)                # (N, Cr)
    g = g1 @ w2g.T + b2g                                       # (N, C)
    gb = (g + b2l)[..., None]                                  # (N, C, 1): g + local bias2

    b1l_col = b1l[:, None]                                     # (Cr, 1)

    T = _pick_hw_tile(HW)
    grid = (N, HW // T)

    out = pl.pallas_call(
        mscam_kernel,
        out_shape=jax.ShapeDtypeStruct((N, C, HW), x.dtype),
        grid=grid,
        in_specs=[
            pl.BlockSpec((None, C, T), lambda n, t: (n, 0, t)),    # x tile
            pl.BlockSpec((Cr, C), lambda n, t: (0, 0)),            # w1 (local)
            pl.BlockSpec((Cr, 1), lambda n, t: (0, 0)),            # b1 (local)
            pl.BlockSpec((C, Cr), lambda n, t: (0, 0)),            # w2 (local)
            pl.BlockSpec((None, C, 1), lambda n, t: (n, 0, 0)),    # gb per batch
        ],
        out_specs=pl.BlockSpec((None, C, T), lambda n, t: (n, 0, t)),
        compiler_params=pltpu.CompilerParams(
            dimension_semantics=("parallel", "parallel")),
    )(x, w1l, b1l_col, w2l, gb)

    return out.reshape(N, C, H, W)


def mscam_reference(x_nchw, params):
    """Pure-JAX reference (same BN-eval semantics) for verification."""
    w1l, b1l = fold_conv_bn(*params["local1"])
    w2l, b2l = fold_conv_bn(*params["local2"])
    w1g, b1g = fold_conv_bn(*params["global1"])
    w2g, b2g = fold_conv_bn(*params["global2"])
    x = jnp.transpose(x_nchw, (0, 2, 3, 1))                        # NHWC
    l = jnp.maximum(x @ w1l.T + b1l, 0.0) @ w2l.T + b2l
    pooled = jnp.mean(x, axis=(1, 2), keepdims=True)
    g = jnp.maximum(pooled @ w1g.T + b1g, 0.0) @ w2g.T + b2g
    out = x * jax.nn.sigmoid(l + g)
    return jnp.transpose(out, (0, 3, 1, 2))


def make_params(key, channels=64, r=4):
    """Deterministic synthetic parameters matching MSCAM.__init__ shapes."""
    inter = channels // r
    keys = jax.random.split(key, 16)
    ki = iter(range(16))

    def conv_bn(out_c, in_c):
        w = jax.random.normal(keys[next(ki)], (out_c, in_c)) * (1.0 / jnp.sqrt(in_c))
        b = jax.random.normal(keys[next(ki)], (out_c,)) * 0.05
        gamma = 0.5 + jax.random.uniform(keys[next(ki)], (out_c,))
        beta = jax.random.normal(keys[next(ki)], (out_c,)) * 0.1
        # deterministic "running" stats for eval-mode BN
        rmean = jnp.linspace(-0.1, 0.1, out_c)
        rvar = 0.5 + jnp.linspace(0.0, 1.0, out_c)
        return (w, b, gamma, beta, rmean, rvar)

    return {
        "local1": conv_bn(inter, channels),
        "local2": conv_bn(channels, inter),
        "global1": conv_bn(inter, channels),
        "global2": conv_bn(channels, inter),
    }


if __name__ == "__main__":
    channels, r = 64, 4
    N, H, W = 2, 16, 16

    key = jax.random.PRNGKey(0)
    kx, kp = jax.random.split(key)
    x = jax.random.normal(kx, (N, channels, H, W), dtype=jnp.float32)  # NCHW, like PyTorch
    params = make_params(kp, channels=channels, r=r)

    out = mscam_forward(x, params)
    out = jax.block_until_ready(out)

    ref = mscam_reference(x, params)
    assert out.shape == x.shape
    assert jnp.allclose(out, ref, atol=2e-3, rtol=2e-3), (
        f"max abs err = {jnp.max(jnp.abs(out - ref))}")

    print("KERNEL_OK")
</pallas_src>

<mosaic_0001>
module attributes {stable_mosaic.version = 11 : i64} {
  func.func @mscam_kernel(%arg0: i32, %arg1: i32, %arg2: memref<1x64x256xf32, #tpu.memory_space<vmem>>, %arg3: memref<16x64xf32, #tpu.memory_space<vmem>>, %arg4: memref<16x1xf32, #tpu.memory_space<vmem>>, %arg5: memref<64x16xf32, #tpu.memory_space<vmem>>, %arg6: memref<1x64x1xf32, #tpu.memory_space<vmem>>, %arg7: memref<1x64x256xf32, #tpu.memory_space<vmem>>) attributes {dimension_semantics = [#tpu.dimension_semantics<parallel>, #tpu.dimension_semantics<parallel>], iteration_bounds = array<i64: 2, 1>, scalar_prefetch = 0 : i64, scratch_operands = 0 : i64, tpu.core_type = #tpu.core_type<tc>, window_params = [{transform_indices = @transform_0, window_bounds = array<i64: 1, 64, 256>}, {pipeline_mode = #tpu.pipeline_mode<synchronous>, transform_indices = @transform_1, window_bounds = array<i64: 16, 64>}, {pipeline_mode = #tpu.pipeline_mode<synchronous>, transform_indices = @transform_2, window_bounds = array<i64: 16, 1>}, {pipeline_mode = #tpu.pipeline_mode<synchronous>, transform_indices = @transform_3, window_bounds = array<i64: 64, 16>}, {transform_indices = @transform_4, window_bounds = array<i64: 1, 64, 1>}, {transform_indices = @transform_5, window_bounds = array<i64: 1, 64, 256>}]} {
    %c0 = arith.constant 0 : index
    %c0_0 = arith.constant 0 : index
    %c0_1 = arith.constant 0 : index
    %0 = vector.load %arg2[%c0, %c0_0, %c0_1] : memref<1x64x256xf32, #tpu.memory_space<vmem>>, vector<1x64x256xf32>
    %1 = vector.shape_cast %0 : vector<1x64x256xf32> to vector<64x256xf32>
    %c0_2 = arith.constant 0 : index
    %c0_3 = arith.constant 0 : index
    %2 = vector.load %arg3[%c0_2, %c0_3] : memref<16x64xf32, #tpu.memory_space<vmem>>, vector<16x64xf32>
    %cst = arith.constant dense<0.000000e+00> : vector<16x256xf32>
    %3 = tpu.matmul %2, %1, %cst {dimension_numbers = #tpu.dot_dimension_numbers<[1], [0], [0], [1], [0, 0, 1, 1], [], []>} : vector<16x64xf32>, vector<64x256xf32>, vector<16x256xf32> -> vector<16x256xf32>
    %c0_4 = arith.constant 0 : index
    %c0_5 = arith.constant 0 : index
    %4 = vector.load %arg4[%c0_4, %c0_5] : memref<16x1xf32, #tpu.memory_space<vmem>>, vector<16x1xf32>
    %5 = vector.broadcast %4 : vector<16x1xf32> to vector<16x256xf32>
    %6 = arith.addf %3, %5 : vector<16x256xf32>
    %cst_6 = arith.constant 0.000000e+00 : f32
    %7 = vector.broadcast %cst_6 : f32 to vector<16x256xf32>
    %8 = arith.maximumf %6, %7 : vector<16x256xf32>
    %c0_7 = arith.constant 0 : index
    %c0_8 = arith.constant 0 : index
    %9 = vector.load %arg5[%c0_7, %c0_8] : memref<64x16xf32, #tpu.memory_space<vmem>>, vector<64x16xf32>
    %cst_9 = arith.constant dense<0.000000e+00> : vector<64x256xf32>
    %10 = tpu.matmul %9, %8, %cst_9 {dimension_numbers = #tpu.dot_dimension_numbers<[1], [0], [0], [1], [0, 0, 1, 1], [], []>} : vector<64x16xf32>, vector<16x256xf32>, vector<64x256xf32> -> vector<64x256xf32>
    %c0_10 = arith.constant 0 : index
    %c0_11 = arith.constant 0 : index
    %c0_12 = arith.constant 0 : index
    %11 = vector.load %arg6[%c0_10, %c0_11, %c0_12] : memref<1x64x1xf32, #tpu.memory_space<vmem>>, vector<1x64x1xf32>
    %12 = vector.shape_cast %11 : vector<1x64x1xf32> to vector<64x1xf32>
    %13 = vector.broadcast %12 : vector<64x1xf32> to vector<64x256xf32>
    %14 = arith.addf %10, %13 : vector<64x256xf32>
    %15 = arith.negf %14 : vector<64x256xf32>
    %16 = math.exp %15 : vector<64x256xf32>
    %cst_13 = arith.constant 1.000000e+00 : f32
    %17 = vector.broadcast %cst_13 : f32 to vector<64x256xf32>
    %18 = arith.addf %17, %16 : vector<64x256xf32>
    %19 = arith.divf %17, %18 : vector<64x256xf32>
    %20 = arith.mulf %1, %19 : vector<64x256xf32>
    %c0_14 = arith.constant 0 : index
    %c0_15 = arith.constant 0 : index
    %c0_16 = arith.constant 0 : index
    %21 = vector.load %arg7[%c0_14, %c0_15, %c0_16] : memref<1x64x256xf32, #tpu.memory_space<vmem>>, vector<1x64x256xf32>
    %22 = vector.shape_cast %21 : vector<1x64x256xf32> to vector<64x256xf32>
    %23 = vector.shape_cast %20 : vector<64x256xf32> to vector<1x64x256xf32>
    tpu.vector_store %arg7[%c0_14, %c0_15, %c0_16], %23 {strides = array<i32>} : memref<1x64x256xf32, #tpu.memory_space<vmem>>, vector<1x64x256xf32>,
    return
  }
  func.func @transform_0(%arg0: i32, %arg1: i32) -> (i32, i32, i32) {
    %c0_i32 = arith.constant 0 : i32
    %c0_i32_0 = arith.constant 0 : i32
    return %arg0, %c0_i32, %arg1 : i32, i32, i32
  }
  func.func @transform_1(%arg0: i32, %arg1: i32) -> (i32, i32) {
    %c0_i32 = arith.constant 0 : i32
    %c0_i32_0 = arith.constant 0 : i32
    %c0_i32_1 = arith.constant 0 : i32
    return %c0_i32, %c0_i32_0 : i32, i32
  }
  func.func @transform_2(%arg0: i32, %arg1: i32) -> (i32, i32) {
    %c0_i32 = arith.constant 0 : i32
    %c0_i32_0 = arith.constant 0 : i32
    %c0_i32_1 = arith.constant 0 : i32
    return %c0_i32, %c0_i32_0 : i32, i32
  }
  func.func @transform_3(%arg0: i32, %arg1: i32) -> (i32, i32) {
    %c0_i32 = arith.constant 0 : i32
    %c0_i32_0 = arith.constant 0 : i32
    %c0_i32_1 = arith.constant 0 : i32
    return %c0_i32, %c0_i32_0 : i32, i32
  }
  func.func @transform_4(%arg0: i32, %arg1: i32) -> (i32, i32, i32) {
    %c0_i32 = arith.constant 0 : i32
    %c0_i32_0 = arith.constant 0 : i32
    %c0_i32_1 = arith.constant 0 : i32
    return %arg0, %c0_i32, %c0_i32_0 : i32, i32, i32
  }
  func.func @transform_5(%arg0: i32, %arg1: i32) -> (i32, i32, i32) {
    %c0_i32 = arith.constant 0 : i32
    %c0_i32_0 = arith.constant 0 : i32
    return %arg0, %c0_i32, %arg1 : i32, i32, i32
  }
}

</mosaic_0001>

<llo_original>
// kernel: tpu_custom_call.1
$region0: #{tpu_custom_call.1}
  #allocation0 [shape = 'u32[]', space=smem, size = 0x4, offset = 0x4, fixed_abs, tag = 'smem constant byte address 0x4 - core index']
  #allocation1 [shape = 'u32[144,128]{1,0:T(1,128)}', space=vmem, size = 0x12000, scoped, tag = 'internal scratch']
  %s0 = inlined_call_operand.hbm [shape: f32[2,64,256], index: 0, kind: input, shape index: {}]
  %s1 = inlined_call_operand.vmem [shape: f32[16,64], index: 1, kind: input, shape index: {}]
  %s2 = inlined_call_operand.vmem [shape: f32[16,1], index: 2, kind: input, shape index: {}]
  %s3 = inlined_call_operand.vmem [shape: f32[64,16], index: 3, kind: input, shape index: {}]
  %s4 = inlined_call_operand.vmem [shape: f32[2,64,1], index: 4, kind: input, shape index: {}]
  %s5 = inlined_call_operand.hbm [shape: f32[2,64,256], index: 5, kind: output, shape index: {}]
  %s6 = sld [smem:[#allocation0]]
  $region57: #{tpu_custom_call.1} parent=0
    _
  %s8 = ssub.s32 1, %s6
  %s9 = scalar_select 0, %s8, %s6
  $region1: #{tpu_custom_call.1} parent=0
    #allocation2 [shape = 'u8[131072]{0}', space=vmem, size = 0x20000, scoped, tag = 'input window, operand 0']
    #allocation3 [shape = 's32[2]{0}', space=sflag, size = 0x8, scoped, tag = 'scoped memory for tpu_custom_call.1']
    #allocation4 [shape = 's32[2]{0}', space=sflag, size = 0x8, scoped, tag = 'scoped memory for tpu_custom_call.1']
    #allocation5 [shape = 'u8[131072]{0}', space=vmem, size = 0x20000, scoped, tag = 'output window, operand 0']
    %10 = vsyncpa [#allocation3], 0
    %s11 = scalar_lea.sflag [#allocation3], 1
    %12 = vsyncpa %s11, 0
    %13 = vsyncpa [#allocation4], 0
    %s14 = scalar_lea.sflag [#allocation4], 1
    %15 = vsyncpa %s14, 0
    loop: start=0, step=1, limit=4
    $region2: #{tpu_custom_call.1} parent=1 // loop_pre_header
      _
    $region3: #{tpu_custom_call.1} parent=1 // loop_header
      %s17 = sphi 0, %s21
      %p18 = scmp.ge.s32.totalorder %s17, 4
      %s24 = sphi 0, %s36
      %s25 = sphi 0, %s32
      %s26 = sphi 0, %s24
      %s27 = sphi 0, %s25
      %s28 = sphi 0, %s26
      %s29 = sphi 0, %s27
      %s41 = sphi 0, %s43
      %s44 = sphi 0, %s41
      %s45 = sphi 0, %s44
      %s61 = sphi 0, %s45
      %s65 = sphi 0, %s65
      %s67 = sphi 0, %s65
      %s68 = sphi 0, %s67
      %s82 = sphi 0, %s68
      %s86 = sphi 0, %s86
      %s88 = sphi 0, %s86
      %s89 = sphi 0, %s88
      %s103 = sphi 0, %s89
      %s107 = sphi 0, %s107
      %s109 = sphi 0, %s107
      %s110 = sphi 0, %s109
      %s124 = sphi 0, %s110
      %s130 = sphi 0, %s132
      %s133 = sphi 0, %s130
      %s134 = sphi 0, %s133
      %s150 = sphi 0, %s134
      %s158 = sphi 0, %s160
      %s161 = sphi 0, %s158
      %s162 = sphi 0, %s161
      %s178 = sphi 0, %s162
    $region4: #{tpu_custom_call.1} parent=1 // loop_header_branch
      %20 = sbr.rel (%p18) target = $region8
    $region5: #{tpu_custom_call.1} parent=1 // loop_body
      %s22 = ssub.s32 %s17, 1
      %s23 = ssub.s32 %s17, 2
      %s30 = sadd.s32 1, %s25
      %p31 = scmp.ge.s32.totalorder %s30, 1
      %s32 = scalar_select %p31, 0, %s30
      %s33 = sadd.s32 1, %s24
      %s34 = scalar_select %p31, %s33, %s24
      %p35 = scmp.ge.s32.totalorder %s34, 2
      %s36 = scalar_select %p35, 0, %s34
      %s37 = ssub.s32 %s24, %s36
      %s38 = ssub.s32 %s25, %s32
      %s39 = sor.u32 %s37, %s38
      %p40 = scmp.eq.s32.totalorder %s39, 0
      %s42 = sadd.s32 %s41, 1
      %s43 = scalar_select %p40, %s41, %s42
      %p46 = pneg %p40
      %p47 = scmp.eq.s32.totalorder %s17, 1
      %p48 = por %p46, %p47
      %p49 = scmp.ne.s32.totalorder %s41, %s44
      %p50 = scmp.eq.s32.totalorder %s17, 0
      %p51 = por %p49, %p50
      %p52 = scmp.ne.s32.totalorder %s41, %s44
      %p53 = scmp.eq.s32.totalorder %s22, 1
      %p54 = por %p52, %p53
      %p55 = scmp.ne.s32.totalorder %s44, %s45
      %p56 = scmp.eq.s32.totalorder %s22, 0
      %p57 = por %p55, %p56
      %p58 = scmp.ne.s32.totalorder %s44, %s45
      %p59 = scmp.eq.s32.totalorder %s23, 1
      %p60 = por %p58, %p59
      %p62 = scmp.ne.s32.totalorder %s45, %s61
      %p63 = scmp.eq.s32.totalorder %s23, 0
      %p64 = por %p62, %p63
      %s66 = sadd.s32 %s65, 1
      %p69 = scmp.eq.s32.totalorder %s17, 1
      %p70 = scmp.ne.s32.totalorder %s65, %s67
      %p71 = scmp.eq.s32.totalorder %s17, 0
      %p72 = por %p70, %p71
      %p73 = scmp.ne.s32.totalorder %s65, %s67
      %p74 = scmp.eq.s32.totalorder %s22, 1
      %p75 = por %p73, %p74
      %p76 = scmp.ne.s32.totalorder %s67, %s68
      %p77 = scmp.eq.s32.totalorder %s22, 0
      %p78 = por %p76, %p77
      %p79 = scmp.ne.s32.totalorder %s67, %s68
      %p80 = scmp.eq.s32.totalorder %s23, 1
      %p81 = por %p79, %p80
      %p83 = scmp.ne.s32.totalorder %s68, %s82
      %p84 = scmp.eq.s32.totalorder %s23, 0
      %p85 = por %p83, %p84
      %s87 = sadd.s32 %s86, 1
      %p90 = scmp.eq.s32.totalorder %s17, 1
      %p91 = scmp.ne.s32.totalorder %s86, %s88
      %p92 = scmp.eq.s32.totalorder %s17, 0
      %p93 = por %p91, %p92
      %p94 = scmp.ne.s32.totalorder %s86, %s88
      %p95 = scmp.eq.s32.totalorder %s22, 1
      %p96 = por %p94, %p95
      %p97 = scmp.ne.s32.totalorder %s88, %s89
      %p98 = scmp.eq.s32.totalorder %s22, 0
      %p99 = por %p97, %p98
      %p100 = scmp.ne.s32.totalorder %s88, %s89
      %p101 = scmp.eq.s32.totalorder %s23, 1
      %p102 = por %p100, %p101
      %p104 = scmp.ne.s32.totalorder %s89, %s103
      %p105 = scmp.eq.s32.totalorder %s23, 0
      %p106 = por %p104, %p105
      %s108 = sadd.s32 %s107, 1
      %p111 = scmp.eq.s32.totalorder %s17, 1
      %p112 = scmp.ne.s32.totalorder %s107, %s109
      %p113 = scmp.eq.s32.totalorder %s17, 0
      %p114 = por %p112, %p113
      %p115 = scmp.ne.s32.totalorder %s107, %s109
      %p116 = scmp.eq.s32.totalorder %s22, 1
      %p117 = por %p115, %p116
      %p118 = scmp.ne.s32.totalorder %s109, %s110
      %p119 = scmp.eq.s32.totalorder %s22, 0
      %p120 = por %p118, %p119
      %p121 = scmp.ne.s32.totalorder %s109, %s110
      %p122 = scmp.eq.s32.totalorder %s23, 1
      %p123 = por %p121, %p122
      %p125 = scmp.ne.s32.totalorder %s110, %s124
      %p126 = scmp.eq.s32.totalorder %s23, 0
      %p127 = por %p125, %p126
      %s128 = ssub.s32 %s24, %s36
      %p129 = scmp.eq.s32.totalorder %s128, 0
      %s131 = sadd.s32 %s130, 1
      %s132 = scalar_select %p129, %s130, %s131
      %p135 = pneg %p129
      %p136 = scmp.eq.s32.totalorder %s17, 1
      %p137 = por %p135, %p136
      %p138 = scmp.ne.s32.totalorder %s130, %s133
      %p139 = scmp.eq.s32.totalorder %s17, 0
      %p140 = por %p138, %p139
      %p141 = scmp.ne.s32.totalorder %s130, %s133
      %p142 = scmp.eq.s32.totalorder %s22, 1
      %p143 = por %p141, %p142
      %p144 = scmp.ne.s32.totalorder %s133, %s134
      %p145 = scmp.eq.s32.totalorder %s22, 0
      %p146 = por %p144, %p145
      %p147 = scmp.ne.s32.totalorder %s133, %s134
      %p148 = scmp.eq.s32.totalorder %s23, 1
      %p149 = por %p147, %p148
      %p151 = scmp.ne.s32.totalorder %s134, %s150
      %p152 = scmp.eq.s32.totalorder %s23, 0
      %p153 = por %p151, %p152
      %s154 = ssub.s32 %s24, %s36
      %s155 = ssub.s32 %s25, %s32
      %s156 = sor.u32 %s154, %s155
      %p157 = scmp.eq.s32.totalorder %s156, 0
      %s159 = sadd.s32 %s158, 1
      %s160 = scalar_select %p157, %s158, %s159
      %p163 = pneg %p157
      %p164 = scmp.eq.s32.totalorder %s17, 1
      %p165 = por %p163, %p164
      %p166 = scmp.ne.s32.totalorder %s158, %s161
      %p167 = scmp.eq.s32.totalorder %s17, 0
      %p168 = por %p166, %p167
      %p169 = scmp.ne.s32.totalorder %s158, %s161
      %p170 = scmp.eq.s32.totalorder %s22, 1
      %p171 = por %p169, %p170
      %p172 = scmp.ne.s32.totalorder %s161, %s162
      %p173 = scmp.eq.s32.totalorder %s22, 0
      %p174 = por %p172, %p173
      %p175 = scmp.ne.s32.totalorder %s161, %s162
      %p176 = scmp.eq.s32.totalorder %s23, 1
      %p177 = por %p175, %p176
      %p179 = scmp.ne.s32.totalorder %s162, %s178
      %p180 = scmp.eq.s32.totalorder %s23, 0
      %p181 = por %p179, %p180
      %p182 = scmp.le.s32.totalorder 1, %s17
      %p183 = scmp.lt.s32.totalorder %s17, 3
      %p184 = pnand %p182, %p183
      %p185 = pneg %p184
      // Predicated region
      $region9: #{tpu_custom_call.1} parent=5 // pred_check
        _
      $region10: #{tpu_custom_call.1} parent=5 // pred_check_branch
        %187 = sbr.rel (%p184) target = $region12
      $region11: #{tpu_custom_call.1} parent=5 // pred_region
        %s188 = ssub.s32 %s17, 1
        // Predicated region
        $region13: #{tpu_custom_call.1} parent=11 // pred_check
          %p189 = pneg %p78
        $region14: #{tpu_custom_call.1} parent=11 // pred_check_branch
          %191 = sbr.rel (%p189) target = $region16
        $region15: #{tpu_custom_call.1} parent=11 // pred_region
          _
        $region16: #{tpu_custom_call.1} parent=11 // pred_fallthru
          _
        // Predicated region
        $region17: #{tpu_custom_call.1} parent=11 // pred_check
          %p192 = pneg %p99
        $region18: #{tpu_custom_call.1} parent=11 // pred_check_branch
          %194 = sbr.rel (%p192) target = $region20
        $region19: #{tpu_custom_call.1} parent=11 // pred_region
          _
        $region20: #{tpu_custom_call.1} parent=11 // pred_fallthru
          _
        // Predicated region
        $region21: #{tpu_custom_call.1} parent=11 // pred_check
          %p195 = pneg %p120
        $region22: #{tpu_custom_call.1} parent=11 // pred_check_branch
          %197 = sbr.rel (%p195) target = $region24
        $region23: #{tpu_custom_call.1} parent=11 // pred_region
          _
        $region24: #{tpu_custom_call.1} parent=11 // pred_fallthru
          _
      $region12: #{tpu_custom_call.1} parent=5 // pred_fallthru
        _
      %p198 = scmp.lt.s32.totalorder %s17, 2
      // Predicated region
      $region25: #{tpu_custom_call.1} parent=5 // pred_check
        %p199 = pneg %p198
      $region26: #{tpu_custom_call.1} parent=5 // pred_check_branch
        %201 = sbr.rel (%p199) target = $region28
      $region27: #{tpu_custom_call.1} parent=5 // pred_region
        // Predicated region
        $region29: #{tpu_custom_call.1} parent=27 // pred_check
          %p202 = pneg %p51
        $region30: #{tpu_custom_call.1} parent=27 // pred_check_branch
          %204 = sbr.rel (%p202) target = $region32
        $region31: #{tpu_custom_call.1} parent=27 // pred_region
          %s205 = sand.u32 %s41, 1
          %s206 = scalar_lea.sflag [#allocation3], %s205
          %s207 = sand.u32 %s41, 1
          %s208 = smul.addr %s207, 128
          %s209 = scalar_lea.vmem [#allocation2], %s208
          %s210 = smul.u32 2, %s25
          %s212 = ssub.s32 2048, 2048
          %213 = vsyncadd %s206, %s212
          %s214 = smul.addr %s24, 16
          %s215 = sadd.s32 %s210, %s214
          %s216 = smul.addr %s215, 128
          %s217 = scalar_lea.hbm %s0, %s216
          %s218 = sshll.u32 %s209, 4
          %s219 = int_to_ptr.vmem [resolvable:$true] %s218
          %224 = dma.hbm_to_vmem [thread:$0]  %s217, 2048, %s219, %s206, 256, 256, 16
        $region32: #{tpu_custom_call.1} parent=27 // pred_fallthru
          _
        // Predicated region
        $region33: #{tpu_custom_call.1} parent=27 // pred_check
          %p225 = pneg %p140
        $region34: #{tpu_custom_call.1} parent=27 // pred_check_branch
          %227 = sbr.rel (%p225) target = $region36
        $region35: #{tpu_custom_call.1} parent=27 // pred_region
          %p228 = scmp.lt.s32.totalorder %s24, 1
          %s229 = scalar_select %p228, %s24, 1
          %s230 = smul.addr %s229, 8
          %s231 = smul.addr %s230, 8
          %s232 = scalar_lea.vmem %s4, %s231
        $region36: #{tpu_custom_call.1} parent=27 // pred_fallthru
          _
      $region28: #{tpu_custom_call.1} parent=5 // pred_fallthru
        _
      %p233 = scmp.le.s32.totalorder 1, %s17
      %p234 = scmp.lt.s32.totalorder %s17, 3
      %p235 = pnand %p233, %p234
      %p236 = pneg %p235
      // Predicated region
      $region37: #{tpu_custom_call.1} parent=5 // pred_check
        _
      $region38: #{tpu_custom_call.1} parent=5 // pred_check_branch
        %238 = sbr.rel (%p235) target = $region40
      $region39: #{tpu_custom_call.1} parent=5 // pred_region
        %s239 = ssub.s32 %s17, 1
        %s240 = sand.u32 %s44, 1
        %s241 = scalar_lea.sflag [#allocation3], %s240
        %s242 = sand.u32 %s44, 1
        %s243 = smul.addr %s242, 128
        %s244 = scalar_lea.vmem [#allocation2], %s243
        // Predicated region
        $region41: #{tpu_custom_call.1} parent=39 // pred_check
          %p245 = pneg %p57
        $region42: #{tpu_custom_call.1} parent=39 // pred_check_branch
          %247 = sbr.rel (%p245) target = $region44
        $region43: #{tpu_custom_call.1} parent=39 // pred_region
          %248 = dma.done %s241, 2048
        $region44: #{tpu_custom_call.1} parent=39 // pred_fallthru
          _
        %s249 = sand.u32 %s44, 1
        %s250 = scalar_lea.sflag [#allocation3], %s249
        %s251 = sand.u32 %s44, 1
        %s252 = smul.addr %s251, 128
        %s253 = scalar_lea.vmem [#allocation2], %s252
        %p254 = pneg %p57
        %p255 = pneg %p54
        %p256 = pneg %p78
        %p257 = pneg %p75
        %p258 = pneg %p99
        %p259 = pneg %p96
        %p260 = pneg %p120
        %p261 = pneg %p117
        %p262 = scmp.lt.s32.totalorder %s26, 1
        %s263 = scalar_select %p262, %s26, 1
        %s264 = smul.addr %s263, 8
        %s265 = smul.addr %s264, 8
        %s266 = scalar_lea.vmem %s4, %s265
        %p267 = pneg %p146
        %p268 = pneg %p143
        %p269 = pneg %p174
        %p270 = pneg %p171
        %s271 = sand.u32 %s161, 1
        %s272 = scalar_lea.sflag [#allocation4], %s271
        %s273 = sand.u32 %s161, 1
        %s274 = smul.addr %s273, 128
        %s275 = scalar_lea.vmem [#allocation5], %s274
        %s276 = smul.u32 2, %s27
        %p277 = scmp.lt.s32.totalorder %s26, 1
        %s278 = scalar_select %p277, %s26, 1
        %s279 = smul.addr %s278, 8
        %s280 = smul.addr %s279, 8
        %s281 = scalar_lea.vmem %s4, %s280
        %s282 = smul.u32 2, %s27
        %v283 = vld [vmem:[%s244] sm:$0xff]
        %v284 = vld [vmem:[%s244 + $0x8] sm:$0xff]
        %v285 = vld [vmem:[%s244 + $0x10] sm:$0xff]
        %v286 = vld [vmem:[%s244 + $0x18] sm:$0xff]
        %v287 = vld [vmem:[%s244 + $0x20] sm:$0xff]
        %v288 = vld [vmem:[%s244 + $0x28] sm:$0xff]
        %v289 = vld [vmem:[%s244 + $0x30] sm:$0xff]
        %v290 = vld [vmem:[%s244 + $0x38] sm:$0xff]
        %v291 = vld [vmem:[%s244 + $0x40] sm:$0xff]
        %v292 = vld [vmem:[%s244 + $0x48] sm:$0xff]
        %v293 = vld [vmem:[%s244 + $0x50] sm:$0xff]
        %v294 = vld [vmem:[%s244 + $0x58] sm:$0xff]
        %v295 = vld [vmem:[%s244 + $0x60] sm:$0xff]
        %v296 = vld [vmem:[%s244 + $0x68] sm:$0xff]
        %v297 = vld [vmem:[%s244 + $0x70] sm:$0xff]
        %v298 = vld [vmem:[%s244 + $0x78] sm:$0xff]
        %v299 = vld [vmem:[%s1] sm:$0xff]
        %v300 = vld [vmem:[%s1 + $0x8] sm:$0xff]
        %v301 = vld [vmem:[%s2] sm:$0xff]
        %v302 = vld [vmem:[%s2 + $0x8] sm:$0xff]
        %304 = vset.pattern.permute.xlu0 0
        %305 = vperm.xlu0 %304, %v301
        %v306 = vpop.permute.xlu0 %305
        %309 = vset.pattern.permute.xlu0 0
        %310 = vperm.xlu0 %309, %v302
        %v311 = vpop.permute.xlu0 %310
        %vm313 = vcmask 523264
        %v315 = vsel %vm313, %v299, 0
        %v318 = vsel %vm313, %v300, 0
        %320 = vmatprep.subr.mxu0 0.0
        %321 = vmatpush1.msra.mxu0 0.0
        %322 = vmatprep.subr.mxu0 0.0
        %323 = vmatpush1.msra.mxu0 0.0
        %324 = vmatprep.subr.mxu0 0.0
        %325 = vmatpush1.msra.mxu0 0.0
        %326 = vmatprep.subr.mxu0 0.0
        %327 = vmatpush1.msra.mxu0 0.0
        %328 = vmatprep.subr.mxu0 0.0
        %329 = vmatpush1.msra.mxu0 0.0
        %330 = vmatprep.subr.mxu0 0.0
        %331 = vmatpush1.msra.mxu0 0.0
        %332 = vmatprep.subr.mxu0 0.0
        %333 = vmatpush1.msra.mxu0 0.0
        %334 = vmatprep.subr.mxu0 0.0
        %335 = vmatpush1.msra.mxu0 0.0
        %336 = vmatprep.subr.mxu0 %v298
        %337 = vmatpush1.msra.mxu0 %v297
        %338 = vmatprep.subr.mxu0 %v296
        %339 = vmatpush1.msra.mxu0 %v295
        %340 = vmatprep.subr.mxu0 %v294
        %341 = vmatpush1.msra.mxu0 %v293
        %342 = vmatprep.subr.mxu0 %v292
        %343 = vmatpush1.msra.mxu0 %v291
        %344 = vmatprep.subr.mxu0 %v290
        %345 = vmatpush1.msra.mxu0 %v289
        %346 = vmatprep.subr.mxu0 %v288
        %347 = vmatpush1.msra.mxu0 %v287
        %348 = vmatprep.subr.mxu0 %v286
        %349 = vmatpush1.msra.mxu0 %v285
        %350 = vmatprep.subr.mxu0 %v284
        %351 = vmatpush1.msra.mxu0 %v283
        %352 = vmatprep.subr.mxu0 0.0
        %353 = vmatpush2.msra.mxu0 0.0
        %354 = vmatprep.subr.mxu0 0.0
        %355 = vmatpush2.msra.mxu0 0.0
        %356 = vmatprep.subr.mxu0 0.0
        %357 = vmatpush2.msra.mxu0 0.0
        %358 = vmatprep.subr.mxu0 0.0
        %359 = vmatpush2.msra.mxu0 0.0
        %360 = vmatprep.subr.mxu0 0.0
        %361 = vmatpush2.msra.mxu0 0.0
        %362 = vmatprep.subr.mxu0 0.0
        %363 = vmatpush2.msra.mxu0 0.0
        %364 = vmatprep.subr.mxu0 0.0
        %365 = vmatpush2.msra.mxu0 0.0
        %366 = vmatprep.subr.mxu0 0.0
        %367 = vmatpush2.msra.mxu0 0.0
        %368 = vmatprep.subr.mxu0 0.0
        %369 = vmatpush2.msra.mxu0 0.0
        %370 = vmatprep.subr.mxu0 0.0
        %371 = vmatpush2.msra.mxu0 0.0
        %372 = vmatprep.subr.mxu0 0.0
        %373 = vmatpush2.msra.mxu0 0.0
        %374 = vmatprep.subr.mxu0 0.0
        %375 = vmatpush2.msra.mxu0 0.0
        %376 = vmatprep.subr.mxu0 0.0
        %377 = vmatpush2.msra.mxu0 0.0
        %378 = vmatprep.subr.mxu0 0.0
        %379 = vmatpush2.msra.mxu0 0.0
        %380 = vmatprep.subr.mxu0 0.0
        %381 = vmatpush2.msra.mxu0 0.0
        %382 = vmatprep.subr.mxu0 0.0
        %383 = vmatpush2.msra.mxu0 0.0
        %384 = vmatprep.mubr.f32.mxu0 0.0
        %385 = vmatmul.mubr.f32.gmra.mxu0 %v315
        %v386 = vpop.f32.mrf.mxu0
        %v387 = vadd.f32 %v306, %v386
        %v388 = vpop.f32.mrf.mxu0
        %v389 = vadd.f32 %v306, %v388
        %390 = vmatprep.mubr.f32.mxu0 0.0
        %391 = vmatmul.mubr.f32.gmra.mxu0 %v318
        %v392 = vpop.f32.mrf.mxu0
        %v393 = vadd.f32 %v311, %v392
        %v394 = vpop.f32.mrf.mxu0
        %v395 = vadd.f32 %v311, %v394
        %396 = vdwg.mxu0
        %v397 = vmax.f32 %v387, 0.0
        %v398 = vmax.f32 %v389, 0.0
        %v399 = vmax.f32 %v393, 0.0
        %v400 = vmax.f32 %v395, 0.0
        %v401 = vld [vmem:[%s3] sm:$0xff]
        %v402 = vld [vmem:[%s3 + $0x8] sm:$0xff]
        %v403 = vld [vmem:[%s3 + $0x10] sm:$0xff]
        %v404 = vld [vmem:[%s3 + $0x18] sm:$0xff]
        %v405 = vld [vmem:[%s3 + $0x20] sm:$0xff]
        %v406 = vld [vmem:[%s3 + $0x28] sm:$0xff]
        %v407 = vld [vmem:[%s3 + $0x30] sm:$0xff]
        %v408 = vld [vmem:[%s3 + $0x38] sm:$0xff]
        %v409 = vld [vmem:[%s281] sm:$0xff]
        %v410 = vld [vmem:[%s281 + $0x8] sm:$0xff]
        %v411 = vld [vmem:[%s281 + $0x10] sm:$0xff]
        %v412 = vld [vmem:[%s281 + $0x18] sm:$0xff]
        %v413 = vld [vmem:[%s281 + $0x20] sm:$0xff]
        %v414 = vld [vmem:[%s281 + $0x28] sm:$0xff]
        %v415 = vld [vmem:[%s281 + $0x30] sm:$0xff]
        %v416 = vld [vmem:[%s281 + $0x38] sm:$0xff]
        %418 = vset.pattern.permute.xlu0 0
        %419 = vperm.xlu0 %418, %v409
        %v420 = vpop.permute.xlu0 %419
        %423 = vset.pattern.permute.xlu0 0
        %424 = vperm.xlu0 %423, %v410
        %v425 = vpop.permute.xlu0 %424
        %428 = vset.pattern.permute.xlu0 0
        %429 = vperm.xlu0 %428, %v411
        %v430 = vpop.permute.xlu0 %429
        %433 = vset.pattern.permute.xlu0 0
        %434 = vperm.xlu0 %433, %v412
        %v435 = vpop.permute.xlu0 %434
        %438 = vset.pattern.permute.xlu0 0
        %439 = vperm.xlu0 %438, %v413
        %v440 = vpop.permute.xlu0 %439
        %443 = vset.pattern.permute.xlu0 0
        %444 = vperm.xlu0 %443, %v414
        %v445 = vpop.permute.xlu0 %444
        %448 = vset.pattern.permute.xlu0 0
        %449 = vperm.xlu0 %448, %v415
        %v450 = vpop.permute.xlu0 %449
        %453 = vset.pattern.permute.xlu0 0
        %454 = vperm.xlu0 %453, %v416
        %v455 = vpop.permute.xlu0 %454
        %vm457 = vcmask 130048
        %v459 = vsel %vm457, %v401, 0
        %v462 = vsel %vm457, %v402, 0
        %v465 = vsel %vm457, %v403, 0
        %v468 = vsel %vm457, %v404, 0
        %v471 = vsel %vm457, %v405, 0
        %v474 = vsel %vm457, %v406, 0
        %v477 = vsel %vm457, %v407, 0
        %v480 = vsel %vm457, %v408, 0
        %482 = vmatprep.subr.mxu0 0.0
        %483 = vmatpush1.msra.mxu0 0.0
        %484 = vmatprep.subr.mxu0 0.0
        %485 = vmatpush1.msra.mxu0 0.0
        %486 = vmatprep.subr.mxu0 0.0
        %487 = vmatpush1.msra.mxu0 0.0
        %488 = vmatprep.subr.mxu0 0.0
        %489 = vmatpush1.msra.mxu0 0.0
        %490 = vmatprep.subr.mxu0 0.0
        %491 = vmatpush1.msra.mxu0 0.0
        %492 = vmatprep.subr.mxu0 0.0
        %493 = vmatpush1.msra.mxu0 0.0
        %494 = vmatprep.subr.mxu0 0.0
        %495 = vmatpush1.msra.mxu0 0.0
        %496 = vmatprep.subr.mxu0 0.0
        %497 = vmatpush1.msra.mxu0 0.0
        %498 = vmatprep.subr.mxu0 0.0
        %499 = vmatpush1.msra.mxu0 0.0
        %500 = vmatprep.subr.mxu0 0.0
        %501 = vmatpush1.msra.mxu0 0.0
        %502 = vmatprep.subr.mxu0 0.0
        %503 = vmatpush1.msra.mxu0 0.0
        %504 = vmatprep.subr.mxu0 0.0
        %505 = vmatpush1.msra.mxu0 0.0
        %506 = vmatprep.subr.mxu0 0.0
        %507 = vmatpush1.msra.mxu0 0.0
        %508 = vmatprep.subr.mxu0 0.0
        %509 = vmatpush1.msra.mxu0 0.0
        %510 = vmatprep.subr.mxu0 %v400
        %511 = vmatpush1.msra.mxu0 %v399
        %512 = vmatprep.subr.mxu0 %v398
        %513 = vmatpush1.msra.mxu0 %v397
        %514 = vmatprep.subr.mxu0 0.0
        %515 = vmatpush2.msra.mxu0 0.0
        %516 = vmatprep.subr.mxu0 0.0
        %517 = vmatpush2.msra.mxu0 0.0
        %518 = vmatprep.subr.mxu0 0.0
        %519 = vmatpush2.msra.mxu0 0.0
        %520 = vmatprep.subr.mxu0 0.0
        %521 = vmatpush2.msra.mxu0 0.0
        %522 = vmatprep.subr.mxu0 0.0
        %523 = vmatpush2.msra.mxu0 0.0
        %524 = vmatprep.subr.mxu0 0.0
        %525 = vmatpush2.msra.mxu0 0.0
        %526 = vmatprep.subr.mxu0 0.0
        %527 = vmatpush2.msra.mxu0 0.0
        %528 = vmatprep.subr.mxu0 0.0
        %529 = vmatpush2.msra.mxu0 0.0
        %530 = vmatprep.subr.mxu0 0.0
        %531 = vmatpush2.msra.mxu0 0.0
        %532 = vmatprep.subr.mxu0 0.0
        %533 = vmatpush2.msra.mxu0 0.0
        %534 = vmatprep.subr.mxu0 0.0
        %535 = vmatpush2.msra.mxu0 0.0
        %536 = vmatprep.subr.mxu0 0.0
        %537 = vmatpush2.msra.mxu0 0.0
        %538 = vmatprep.subr.mxu0 0.0
        %539 = vmatpush2.msra.mxu0 0.0
        %540 = vmatprep.subr.mxu0 0.0
        %541 = vmatpush2.msra.mxu0 0.0
        %542 = vmatprep.subr.mxu0 0.0
        %543 = vmatpush2.msra.mxu0 0.0
        %544 = vmatprep.subr.mxu0 0.0
        %545 = vmatpush2.msra.mxu0 0.0
        %546 = vmatprep.mubr.f32.mxu0 0.0
        %547 = vmatmul.mubr.f32.gmra.mxu0 %v459
        %v548 = vpop.f32.mrf.mxu0
        %v549 = vadd.f32 %v420, %v548
        %v550 = vpop.f32.mrf.mxu0
        %v551 = vadd.f32 %v420, %v550
        %552 = vmatprep.mubr.f32.mxu0 0.0
        %553 = vmatmul.mubr.f32.gmra.mxu0 %v462
        %v554 = vpop.f32.mrf.mxu0
        %v555 = vadd.f32 %v425, %v554
        %v556 = vpop.f32.mrf.mxu0
        %v557 = vadd.f32 %v425, %v556
        %558 = vmatprep.mubr.f32.mxu0 0.0
        %559 = vmatmul.mubr.f32.gmra.mxu0 %v465
        %v560 = vpop.f32.mrf.mxu0
        %v561 = vadd.f32 %v430, %v560
        %v562 = vpop.f32.mrf.mxu0
        %v563 = vadd.f32 %v430, %v562
        %564 = vmatprep.mubr.f32.mxu0 0.0
        %565 = vmatmul.mubr.f32.gmra.mxu0 %v468
        %v566 = vpop.f32.mrf.mxu0
        %v567 = vadd.f32 %v435, %v566
        %v568 = vpop.f32.mrf.mxu0
        %v569 = vadd.f32 %v435, %v568
        %570 = vmatprep.mubr.f32.mxu0 0.0
        %571 = vmatmul.mubr.f32.gmra.mxu0 %v471
        %v572 = vpop.f32.mrf.mxu0
        %v573 = vadd.f32 %v440, %v572
        %v574 = vpop.f32.mrf.mxu0
        %v575 = vadd.f32 %v440, %v574
        %576 = vmatprep.mubr.f32.mxu0 0.0
        %577 = vmatmul.mubr.f32.gmra.mxu0 %v474
        %v578 = vpop.f32.mrf.mxu0
        %v579 = vadd.f32 %v445, %v578
        %v580 = vpop.f32.mrf.mxu0
        %v581 = vadd.f32 %v445, %v580
        %582 = vmatprep.mubr.f32.mxu0 0.0
        %583 = vmatmul.mubr.f32.gmra.mxu0 %v477
        %v584 = vpop.f32.mrf.mxu0
        %v585 = vadd.f32 %v450, %v584
        %v586 = vpop.f32.mrf.mxu0
        %v587 = vadd.f32 %v450, %v586
        %588 = vmatprep.mubr.f32.mxu0 0.0
        %589 = vmatmul.mubr.f32.gmra.mxu0 %v480
        %v590 = vpop.f32.mrf.mxu0
        %v591 = vadd.f32 %v455, %v590
        %v592 = vpop.f32.mrf.mxu0
        %v593 = vadd.f32 %v455, %v592
        %594 = vdwg.mxu0
        %v595 = vxor.u32 %v549, 2147483648
        %v596 = vxor.u32 %v551, 2147483648
        %v597 = vxor.u32 %v555, 2147483648
        %v598 = vxor.u32 %v557, 2147483648
        %v599 = vxor.u32 %v561, 2147483648
        %v600 = vxor.u32 %v563, 2147483648
        %v601 = vxor.u32 %v567, 2147483648
        %v602 = vxor.u32 %v569, 2147483648
        %v603 = vxor.u32 %v573, 2147483648
        %v604 = vxor.u32 %v575, 2147483648
        %v605 = vxor.u32 %v579, 2147483648
        %v606 = vxor.u32 %v581, 2147483648
        %v607 = vxor.u32 %v585, 2147483648
        %v608 = vxor.u32 %v587, 2147483648
        %v609 = vxor.u32 %v591, 2147483648
        %v610 = vxor.u32 %v593, 2147483648
        %v611 = vmul.f32 %v595, 1.442695
        %v612 = vpow.pop %v611
        %v613 = vmul.f32 %v596, 1.442695
        %v614 = vpow.pop %v613
        %v615 = vmul.f32 %v597, 1.442695
        %v616 = vpow.pop %v615
        %v617 = vmul.f32 %v598, 1.442695
        %v618 = vpow.pop %v617
        %v619 = vmul.f32 %v599, 1.442695
        %v620 = vpow.pop %v619
        %v621 = vmul.f32 %v600, 1.442695
        %v622 = vpow.pop %v621
        %v623 = vmul.f32 %v601, 1.442695
        %v624 = vpow.pop %v623
        %v625 = vmul.f32 %v602, 1.442695
        %v626 = vpow.pop %v625
        %v627 = vmul.f32 %v603, 1.442695
        %v628 = vpow.pop %v627
        %v629 = vmul.f32 %v604, 1.442695
        %v630 = vpow.pop %v629
        %v631 = vmul.f32 %v605, 1.442695
        %v632 = vpow.pop %v631
        %v633 = vmul.f32 %v606, 1.442695
        %v634 = vpow.pop %v633
        %v635 = vmul.f32 %v607, 1.442695
        %v636 = vpow.pop %v635
        %v637 = vmul.f32 %v608, 1.442695
        %v638 = vpow.pop %v637
        %v639 = vmul.f32 %v609, 1.442695
        %v640 = vpow.pop %v639
        %v641 = vmul.f32 %v610, 1.442695
        %v642 = vpow.pop %v641
        %v643 = vadd.f32 %v612, 1.0
        %v644 = vadd.f32 %v614, 1.0
        %v645 = vadd.f32 %v616, 1.0
        %v646 = vadd.f32 %v618, 1.0
        %v647 = vadd.f32 %v620, 1.0
        %v648 = vadd.f32 %v622, 1.0
        %v649 = vadd.f32 %v624, 1.0
        %v650 = vadd.f32 %v626, 1.0
        %v651 = vadd.f32 %v628, 1.0
        %v652 = vadd.f32 %v630, 1.0
        %v653 = vadd.f32 %v632, 1.0
        %v654 = vadd.f32 %v634, 1.0
        %v655 = vadd.f32 %v636, 1.0
        %v656 = vadd.f32 %v638, 1.0
        %v657 = vadd.f32 %v640, 1.0
        %v658 = vadd.f32 %v642, 1.0
        %v659 = vrcp.pop %v643
        %v660 = vmul.f32 1.0, %v659
        %v661 = vrcp.pop %v644
        %v662 = vmul.f32 1.0, %v661
        %v663 = vrcp.pop %v645
        %v664 = vmul.f32 1.0, %v663
        %v665 = vrcp.pop %v646
        %v666 = vmul.f32 1.0, %v665
        %v667 = vrcp.pop %v647
        %v668 = vmul.f32 1.0, %v667
        %v669 = vrcp.pop %v648
        %v670 = vmul.f32 1.0, %v669
        %v671 = vrcp.pop %v649
        %v672 = vmul.f32 1.0, %v671
        %v673 = vrcp.pop %v650
        %v674 = vmul.f32 1.0, %v673
        %v675 = vrcp.pop %v651
        %v676 = vmul.f32 1.0, %v675
        %v677 = vrcp.pop %v652
        %v678 = vmul.f32 1.0, %v677
        %v679 = vrcp.pop %v653
        %v680 = vmul.f32 1.0, %v679
        %v681 = vrcp.pop %v654
        %v682 = vmul.f32 1.0, %v681
        %v683 = vrcp.pop %v655
        %v684 = vmul.f32 1.0, %v683
        %v685 = vrcp.pop %v656
        %v686 = vmul.f32 1.0, %v685
        %v687 = vrcp.pop %v657
        %v688 = vmul.f32 1.0, %v687
        %v689 = vrcp.pop %v658
        %v690 = vmul.f32 1.0, %v689
        %v691 = vmul.f32 %v283, %v660
        %v692 = vmul.f32 %v284, %v662
        %v693 = vmul.f32 %v285, %v664
        %v694 = vmul.f32 %v286, %v666
        %v695 = vmul.f32 %v287, %v668
        %v696 = vmul.f32 %v288, %v670
        %v697 = vmul.f32 %v289, %v672
        %v698 = vmul.f32 %v290, %v674
        %v699 = vmul.f32 %v291, %v676
        %v700 = vmul.f32 %v292, %v678
        %v701 = vmul.f32 %v293, %v680
        %v702 = vmul.f32 %v294, %v682
        %v703 = vmul.f32 %v295, %v684
        %v704 = vmul.f32 %v296, %v686
        %v705 = vmul.f32 %v297, %v688
        %v706 = vmul.f32 %v298, %v690
        %707 = vst [vmem:[%s275] sm:$0xff] %v691
        %708 = vst [vmem:[%s275 + $0x8] sm:$0xff] %v692
        %709 = vst [vmem:[%s275 + $0x10] sm:$0xff] %v693
        %710 = vst [vmem:[%s275 + $0x18] sm:$0xff] %v694
        %711 = vst [vmem:[%s275 + $0x20] sm:$0xff] %v695
        %712 = vst [vmem:[%s275 + $0x28] sm:$0xff] %v696
        %713 = vst [vmem:[%s275 + $0x30] sm:$0xff] %v697
        %714 = vst [vmem:[%s275 + $0x38] sm:$0xff] %v698
        %715 = vst [vmem:[%s275 + $0x40] sm:$0xff] %v699
        %716 = vst [vmem:[%s275 + $0x48] sm:$0xff] %v700
        %717 = vst [vmem:[%s275 + $0x50] sm:$0xff] %v701
        %718 = vst [vmem:[%s275 + $0x58] sm:$0xff] %v702
        %719 = vst [vmem:[%s275 + $0x60] sm:$0xff] %v703
        %720 = vst [vmem:[%s275 + $0x68] sm:$0xff] %v704
        %721 = vst [vmem:[%s275 + $0x70] sm:$0xff] %v705
        %722 = vst [vmem:[%s275 + $0x78] sm:$0xff] %v706
        %s723 = sand.u32 %s161, 1
        %s724 = scalar_lea.sflag [#allocation4], %s723
        %s725 = sand.u32 %s161, 1
        %s726 = smul.addr %s725, 128
        %s727 = scalar_lea.vmem [#allocation5], %s726
        // Predicated region
        $region45: #{tpu_custom_call.1} parent=39 // pred_check
          %p728 = pneg %p171
        $region46: #{tpu_custom_call.1} parent=39 // pred_check_branch
          %730 = sbr.rel (%p728) target = $region48
        $region47: #{tpu_custom_call.1} parent=39 // pred_region
          %s731 = smul.u32 2, %s27
          %s733 = ssub.s32 2048, 2048
          %734 = vsyncadd %s724, %s733
          %s735 = smul.addr %s26, 16
          %s736 = sadd.s32 %s731, %s735
          %s737 = smul.addr %s736, 128
          %s738 = scalar_lea.hbm %s5, %s737
          %s739 = sshll.u32 %s727, 4
          %s740 = int_to_ptr.vmem [resolvable:$true] %s739
          %745 = dma.vmem_to_hbm [thread:$0]  %s740, 2048, %s738, %s724, 256, 256, 16
        $region48: #{tpu_custom_call.1} parent=39 // pred_fallthru
          _
      $region40: #{tpu_custom_call.1} parent=5 // pred_fallthru
        _
      %p746 = scmp.le.s32.totalorder 2, %s17
      // Predicated region
      $region49: #{tpu_custom_call.1} parent=5 // pred_check
        %p747 = pneg %p746
      $region50: #{tpu_custom_call.1} parent=5 // pred_check_branch
        %749 = sbr.rel (%p747) target = $region52
      $region51: #{tpu_custom_call.1} parent=5 // pred_region
        %s750 = ssub.s32 %s17, 2
        // Predicated region
        $region53: #{tpu_custom_call.1} parent=51 // pred_check
          %p751 = pneg %p177
        $region54: #{tpu_custom_call.1} parent=51 // pred_check_branch
          %753 = sbr.rel (%p751) target = $region56
        $region55: #{tpu_custom_call.1} parent=51 // pred_region
          %s754 = sand.u32 %s162, 1
          %s755 = scalar_lea.sflag [#allocation4], %s754
          %s756 = sand.u32 %s162, 1
          %s757 = smul.addr %s756, 128
          %s758 = scalar_lea.vmem [#allocation5], %s757
          %759 = dma.done %s755, 2048
        $region56: #{tpu_custom_call.1} parent=51 // pred_fallthru
          _
      $region52: #{tpu_custom_call.1} parent=5 // pred_fallthru
        _
    $region6: #{tpu_custom_call.1} parent=1 // loop_footer
      %s21 = sadd.s32 1, %s17
    $region7: #{tpu_custom_call.1} parent=1 // loop_footer_branch
      %16 = sbr.rel target = $region3
    $region8: #{tpu_custom_call.1} parent=1 // loop_exit
      _
    %760 = vsyncpa [#allocation3], 1
    %s761 = scalar_lea.sflag [#allocation3], 1
    %762 = vsyncpa %s761, 1
    %763 = vsyncpa [#allocation4], 1
    %s764 = scalar_lea.sflag [#allocation4], 1
    %765 = vsyncpa %s764, 1

</llo_original>
